<compile_context>
chip_gen: v5e
topology: v5e:2x2
jax: 0.10.0
libtpu: 0.0.40
codegen_flags: <defaults>
</compile_context>

<pallas_src>
import functools

import jax
import jax.numpy as jnp
from jax.experimental import pallas as pl
from jax.experimental.pallas import tpu as pltpu


LANES = 128  # all output-channel dims are padded to the 128-lane vreg width


# ----------------------------- Pallas kernels ------------------------------

def _conv_mm_kernel(x_ref, w_ref, b_ref, o_ref, *, relu_out):
    """out = maybe_relu(x @ w + b) for one (Mb, K) x (K, 128) tile."""
    acc = jnp.dot(x_ref[...], w_ref[...], preferred_element_type=jnp.float32)
    acc = acc + b_ref[...]
    if relu_out:
        acc = jnp.maximum(acc, 0.0)
    o_ref[...] = acc


def conv_mm(cols, w, b, *, batch, relu_out=True):
    """Fused conv-as-matmul (+bias, +ReLU) with a parallel grid over batch."""
    bm, k = cols.shape
    mb = bm // batch
    n = w.shape[1]
    assert mb % 8 == 0, "per-batch patch count must be sublane (8) aligned"
    kernel = functools.partial(_conv_mm_kernel, relu_out=relu_out)
    return pl.pallas_call(
        kernel,
        grid=(batch,),
        in_specs=[
            pl.BlockSpec((mb, k), lambda i: (i, 0)),
            pl.BlockSpec((k, n), lambda i: (0, 0)),
            pl.BlockSpec((1, n), lambda i: (0, 0)),
        ],
        out_specs=pl.BlockSpec((mb, n), lambda i: (i, 0)),
        out_shape=jax.ShapeDtypeStruct((bm, n), jnp.float32),
        compiler_params=pltpu.CompilerParams(
            dimension_semantics=("parallel",)),
    )(cols, w, b)


def _tail_kernel(xin_ref, w3_ref, b3_ref, w4_ref, b4_ref, wr3_ref, wr1_ref,
                 o_ref, x_scr, xr_scr, row_scr, *, H, W, L, K3, K4):
    """conv_3 (k4,p2) -> conv_4 (k3,p1) -> ResidualStack -> ReLU, per batch item.

    VMEM-resident state:
      x_scr  : (H+2, W+2, 128) current activation with zero halo (conv-4/res pad)
      xr_scr : same shape, ReLU'd copy used by the residual 3x3 taps
      row_scr: (H, W, 128) per-layer row buffer (conv_4 rows / residual delta)
    Each conv output row is one MXU matmul: the K*K taps are lane-concatenated
    (128-aligned pieces) into a (W, K*K*128) patch.
    """
    x_scr[...] = jnp.zeros_like(x_scr)

    # ---- conv_3: 4x4, pad 2, stride 1, + bias + ReLU -----------------------
    for y in range(H):
        pieces = []
        for di in range(K3):
            slab = xin_ref[0, y + di]                      # (W+3, 128)
            for dj in range(K3):
                pieces.append(slab[dj:dj + W, :])          # (W, 128)
        patch = jnp.concatenate(pieces, axis=-1)           # (W, K3*K3*128)
        row = jnp.dot(patch, w3_ref[...],
                      preferred_element_type=jnp.float32) + b3_ref[...]
        x_scr[y + 1, pl.ds(1, W), :] = jnp.maximum(row, 0.0)

    # ---- conv_4: 3x3, pad 1, stride 1, + bias (no ReLU) --------------------
    for y in range(H):
        pieces = []
        for di in range(K4):
            slab = x_scr[y + di]                           # (W+2, 128)
            for dj in range(K4):
                pieces.append(slab[dj:dj + W, :])
        patch = jnp.concatenate(pieces, axis=-1)           # (W, K4*K4*128)
        row_scr[y] = jnp.dot(patch, w4_ref[...],
                             preferred_element_type=jnp.float32) + b4_ref[...]
    x_scr[pl.ds(1, H), pl.ds(1, W), :] = row_scr[...]

    # ---- ResidualStack: x += conv1x1(relu(conv3x3(relu(x)))) ---------------
    for li in range(L):
        xr_scr[...] = jnp.maximum(x_scr[...], 0.0)         # ReLU once, un-expanded
        for y in range(H):
            pieces = []
            for di in range(K4):
                slab = xr_scr[y + di]
                for dj in range(K4):
                    pieces.append(slab[dj:dj + W, :])
            patch = jnp.concatenate(pieces, axis=-1)
            h = jnp.maximum(
                jnp.dot(patch, wr3_ref[li],
                        preferred_element_type=jnp.float32), 0.0)
            row_scr[y] = jnp.dot(h, wr1_ref[li],
                                 preferred_element_type=jnp.float32)
        x_scr[pl.ds(1, H), pl.ds(1, W), :] = (
            x_scr[pl.ds(1, H), pl.ds(1, W), :] + row_scr[...])

    # ---- final stack ReLU --------------------------------------------------
    o_ref[0] = jnp.maximum(x_scr[pl.ds(1, H), pl.ds(1, W), :], 0.0)


def tail_fused(xpad, w3, b3, w4, b4, wr3, wr1, *, H, W, L):
    B, HP3, WP3, C = xpad.shape
    kernel = functools.partial(_tail_kernel, H=H, W=W, L=L, K3=4, K4=3)
    return pl.pallas_call(
        kernel,
        grid=(B,),
        in_specs=[
            pl.BlockSpec((1, HP3, WP3, C), lambda b: (b, 0, 0, 0)),
            pl.BlockSpec(w3.shape, lambda b: (0, 0)),
            pl.BlockSpec(b3.shape, lambda b: (0, 0)),
            pl.BlockSpec(w4.shape, lambda b: (0, 0)),
            pl.BlockSpec(b4.shape, lambda b: (0, 0)),
            pl.BlockSpec(wr3.shape, lambda b: (0, 0, 0)),
            pl.BlockSpec(wr1.shape, lambda b: (0, 0, 0)),
        ],
        out_specs=pl.BlockSpec((1, H, W, C), lambda b: (b, 0, 0, 0)),
        out_shape=jax.ShapeDtypeStruct((B, H, W, C), jnp.float32),
        scratch_shapes=[
            pltpu.VMEM((H + 2, W + 2, C), jnp.float32),   # x_scr
            pltpu.VMEM((H + 2, W + 2, C), jnp.float32),   # xr_scr
            pltpu.VMEM((H, W, C), jnp.float32),           # row_scr
        ],
        compiler_params=pltpu.CompilerParams(
            dimension_semantics=("parallel",),
            vmem_limit_bytes=32 * 1024 * 1024),
    )(xpad, w3, b3, w4, b4, wr3, wr1)


# --------------------------- one-time weight packing -------------------------

def _pack_conv(w_oihw, cin_pad=None, cout_pad=LANES):
    """PyTorch (OC,IC,KH,KW) -> (KH*KW*ICpad, OCpad), tap order (kh,kw,ic)."""
    oc, ic, kh, kw = w_oihw.shape
    w = jnp.transpose(w_oihw, (2, 3, 1, 0)).astype(jnp.float32)   # (kh,kw,ic,oc)
    if cin_pad is not None and cin_pad > ic:
        w = jnp.pad(w, ((0, 0), (0, 0), (0, cin_pad - ic), (0, 0)))
        ic = cin_pad
    w = w.reshape(kh * kw * ic, oc)
    if cout_pad > oc:
        w = jnp.pad(w, ((0, 0), (0, cout_pad - oc)))
    return w


def _pack_bias(b, cout_pad=LANES):
    b = b.astype(jnp.float32)
    return jnp.pad(b, (0, cout_pad - b.shape[0])).reshape(1, cout_pad)


def pack_params(params):
    L = len(params['res'])
    if L == 0:
        wr3 = jnp.zeros((1, 9 * LANES, LANES), jnp.float32)
        wr1 = jnp.zeros((1, LANES, LANES), jnp.float32)
    else:
        wr3 = jnp.stack([_pack_conv(w3, cin_pad=LANES) for w3, _ in params['res']])
        wr1 = jnp.stack([_pack_conv(w1, cin_pad=LANES) for _, w1 in params['res']])
    return {
        'w1': _pack_conv(params['conv1_w']), 'b1': _pack_bias(params['conv1_b']),
        'w2': _pack_conv(params['conv2_w']), 'b2': _pack_bias(params['conv2_b']),
        'w3': _pack_conv(params['conv3_w'], cin_pad=LANES),
        'b3': _pack_bias(params['conv3_b']),
        'w4': _pack_conv(params['conv4_w'], cin_pad=LANES),
        'b4': _pack_bias(params['conv4_b']),
        'wr3': wr3, 'wr1': wr1,
        'c1': params['conv1_w'].shape[0],      # conv_1 out channels
        'nh': params['conv4_w'].shape[0],      # num_hiddens
        'L': L,
    }


# ------------------------------- JAX glue ----------------------------------

def _im2col_s2(x_nhwc, k, pad):
    """im2col for the stride-2 front convs (tiny K); tap order (kh,kw,ic)."""
    n, h, w, c = x_nhwc.shape
    xp = jnp.pad(x_nhwc, ((0, 0), (pad, pad), (pad, pad), (0, 0)))
    oh = (h + 2 * pad - k) // 2 + 1
    ow = (w + 2 * pad - k) // 2 + 1
    cols = []
    for i in range(k):
        for j in range(k):
            cols.append(xp[:, i:i + 2 * oh:2, j:j + 2 * ow:2, :])
    cols = jnp.concatenate(cols, axis=-1)
    return cols.reshape(n * oh * ow, k * k * c), (oh, ow)


def encoder_forward(packed, x_nchw):
    B = x_nchw.shape[0]
    x = jnp.transpose(x_nchw, (0, 2, 3, 1)).astype(jnp.float32)       # NHWC

    # conv_1: k=4 s=2 p=1 + ReLU  (stride-2: kept as im2col + fused matmul)
    cols, (oh, ow) = _im2col_s2(x, 4, 1)
    x = conv_mm(cols, packed['w1'], packed['b1'], batch=B)
    x = x.reshape(B, oh, ow, LANES)[..., :packed['c1']]

    # conv_2: k=4 s=2 p=1 + ReLU
    cols, (oh, ow) = _im2col_s2(x, 4, 1)
    x = conv_mm(cols, packed['w2'], packed['b2'], batch=B)
    x = x.reshape(B, oh, ow, LANES)           # padded channels are exact zeros

    # conv_3 + conv_4 + ResidualStack + final ReLU: one fused VMEM-resident kernel
    xpad = jnp.pad(x, ((0, 0), (2, 2), (2, 2), (0, 0)))    # conv_3 halo (p=2)
    H, W = oh + 1, ow + 1
    out = tail_fused(xpad, packed['w3'], packed['b3'], packed['w4'], packed['b4'],
                     packed['wr3'], packed['wr1'], H=H, W=W, L=packed['L'])
    out = out[..., :packed['nh']]
    return jnp.transpose(out, (0, 3, 1, 2))                # back to NCHW


# --------------------------- pure-JAX reference -----------------------------

def _conv2d_ref(x, w, b, stride, pad):
    out = jax.lax.conv_general_dilated(
        x, w, (stride, stride), [(pad, pad), (pad, pad)],
        dimension_numbers=('NCHW', 'OIHW', 'NCHW'))
    if b is not None:
        out = out + b[None, :, None, None]
    return out


def encoder_ref(params, x):
    x = jax.nn.relu(_conv2d_ref(x, params['conv1_w'], params['conv1_b'], 2, 1))
    x = jax.nn.relu(_conv2d_ref(x, params['conv2_w'], params['conv2_b'], 2, 1))
    x = jax.nn.relu(_conv2d_ref(x, params['conv3_w'], params['conv3_b'], 1, 2))
    x = _conv2d_ref(x, params['conv4_w'], params['conv4_b'], 1, 1)
    for w3, w1 in params['res']:
        h = _conv2d_ref(jax.nn.relu(x), w3, None, 1, 1)
        h = _conv2d_ref(jax.nn.relu(h), w1, None, 1, 0)
        x = x + h
    return jax.nn.relu(x)


# --------------------------------- main -------------------------------------

if __name__ == "__main__":
    key = jax.random.PRNGKey(0)
    B, C_in, H, W = 2, 3, 16, 16
    num_hiddens, num_res_layers, num_res_hiddens = 32, 2, 8

    ks = jax.random.split(key, 16)

    def init(k, shape, scale=0.1):
        return scale * jax.random.normal(k, shape, jnp.float32)

    params = {
        'conv1_w': init(ks[0], (num_hiddens // 2, C_in, 4, 4)),
        'conv1_b': init(ks[1], (num_hiddens // 2,)),
        'conv2_w': init(ks[2], (num_hiddens, num_hiddens // 2, 4, 4)),
        'conv2_b': init(ks[3], (num_hiddens,)),
        'conv3_w': init(ks[4], (num_hiddens, num_hiddens, 4, 4)),
        'conv3_b': init(ks[5], (num_hiddens,)),
        'conv4_w': init(ks[6], (num_hiddens, num_hiddens, 3, 3)),
        'conv4_b': init(ks[7], (num_hiddens,)),
        'res': [
            (init(ks[8 + 2 * i], (num_res_hiddens, num_hiddens, 3, 3)),
             init(ks[9 + 2 * i], (num_hiddens, num_res_hiddens, 1, 1)))
            for i in range(num_res_layers)
        ],
    }

    x = jax.random.normal(ks[14], (B, C_in, H, W), jnp.float32)

    packed = pack_params(params)            # one-time weight layout packing
    out = encoder_forward(packed, x)
    out = jax.block_until_ready(out)

    ref = encoder_ref(params, x)
    assert out.shape == ref.shape, (out.shape, ref.shape)
    max_err = float(jnp.max(jnp.abs(out - ref)))
    assert max_err < 5e-4, f"max abs err {max_err}"

    print("KERNEL_OK")
</pallas_src>

<mosaic_0001>
module attributes {stable_mosaic.version = 11 : i64} {
  func.func @_conv_mm_kernel(%arg0: i32, %arg1: memref<64x48xf32, #tpu.memory_space<vmem>>, %arg2: memref<48x128xf32, #tpu.memory_space<vmem>>, %arg3: memref<1x128xf32, #tpu.memory_space<vmem>>, %arg4: memref<64x128xf32, #tpu.memory_space<vmem>>) attributes {dimension_semantics = [#tpu.dimension_semantics<parallel>], iteration_bounds = array<i64: 2>, scalar_prefetch = 0 : i64, scratch_operands = 0 : i64, tpu.core_type = #tpu.core_type<tc>, window_params = [{transform_indices = @transform_0, window_bounds = array<i64: 64, 48>}, {pipeline_mode = #tpu.pipeline_mode<synchronous>, transform_indices = @transform_1, window_bounds = array<i64: 48, 128>}, {pipeline_mode = #tpu.pipeline_mode<synchronous>, transform_indices = @transform_2, window_bounds = array<i64: 1, 128>}, {transform_indices = @transform_3, window_bounds = array<i64: 64, 128>}]} {
    %c0 = arith.constant 0 : index
    %c0_0 = arith.constant 0 : index
    %0 = vector.load %arg1[%c0, %c0_0] : memref<64x48xf32, #tpu.memory_space<vmem>>, vector<64x48xf32>
    %c0_1 = arith.constant 0 : index
    %c0_2 = arith.constant 0 : index
    %1 = vector.load %arg2[%c0_1, %c0_2] : memref<48x128xf32, #tpu.memory_space<vmem>>, vector<48x128xf32>
    %cst = arith.constant dense<0.000000e+00> : vector<64x128xf32>
    %2 = tpu.matmul %0, %1, %cst {dimension_numbers = #tpu.dot_dimension_numbers<[1], [0], [0], [1], [0, 0, 1, 1], [], []>} : vector<64x48xf32>, vector<48x128xf32>, vector<64x128xf32> -> vector<64x128xf32>
    %c0_3 = arith.constant 0 : index
    %c0_4 = arith.constant 0 : index
    %3 = vector.load %arg3[%c0_3, %c0_4] : memref<1x128xf32, #tpu.memory_space<vmem>>, vector<1x128xf32>
    %4 = vector.broadcast %3 : vector<1x128xf32> to vector<64x128xf32>
    %5 = arith.addf %2, %4 : vector<64x128xf32>
    %cst_5 = arith.constant 0.000000e+00 : f32
    %6 = vector.broadcast %cst_5 : f32 to vector<64x128xf32>
    %7 = arith.maximumf %5, %6 : vector<64x128xf32>
    %c0_6 = arith.constant 0 : index
    %c0_7 = arith.constant 0 : index
    %8 = vector.load %arg4[%c0_6, %c0_7] : memref<64x128xf32, #tpu.memory_space<vmem>>, vector<64x128xf32>
    tpu.vector_store %arg4[%c0_6, %c0_7], %7 {strides = array<i32>} : memref<64x128xf32, #tpu.memory_space<vmem>>, vector<64x128xf32>,
    return
  }
  func.func @transform_0(%arg0: i32) -> (i32, i32) {
    %c0_i32 = arith.constant 0 : i32
    %c0_i32_0 = arith.constant 0 : i32
    return %arg0, %c0_i32 : i32, i32
  }
  func.func @transform_1(%arg0: i32) -> (i32, i32) {
    %c0_i32 = arith.constant 0 : i32
    %c0_i32_0 = arith.constant 0 : i32
    %c0_i32_1 = arith.constant 0 : i32
    return %c0_i32, %c0_i32_0 : i32, i32
  }
  func.func @transform_2(%arg0: i32) -> (i32, i32) {
    %c0_i32 = arith.constant 0 : i32
    %c0_i32_0 = arith.constant 0 : i32
    %c0_i32_1 = arith.constant 0 : i32
    return %c0_i32, %c0_i32_0 : i32, i32
  }
  func.func @transform_3(%arg0: i32) -> (i32, i32) {
    %c0_i32 = arith.constant 0 : i32
    %c0_i32_0 = arith.constant 0 : i32
    return %arg0, %c0_i32 : i32, i32
  }
}

</mosaic_0001>

<llo_original>
// kernel: tpu_custom_call.1
$region0: #{tpu_custom_call.1}
  #allocation0 [shape = 'u32[]', space=smem, size = 0x4, offset = 0x4, fixed_abs, tag = 'smem constant byte address 0x4 - core index']
  #allocation1 [shape = 'u32[72,128]{1,0:T(1,128)}', space=vmem, size = 0x9000, scoped, tag = 'internal scratch']
  %s0 = inlined_call_operand.vmem [shape: f32[128,48], index: 0, kind: input, shape index: {}]
  %s1 = inlined_call_operand.vmem [shape: f32[48,128], index: 1, kind: input, shape index: {}]
  %s2 = inlined_call_operand.vmem [shape: f32[1,128], index: 2, kind: input, shape index: {}]
  %s3 = inlined_call_operand.hbm [shape: f32[128,128], index: 3, kind: output, shape index: {}]
  %s4 = sld [smem:[#allocation0]]
  $region45: #{tpu_custom_call.1} parent=0
    _
  %s6 = ssub.s32 1, %s4
  %s7 = scalar_select 0, %s6, %s4
  $region1: #{tpu_custom_call.1} parent=0
    #allocation2 [shape = 'u8[65536]{0}', space=vmem, size = 0x10000, scoped, tag = 'output window, operand 0']
    #allocation3 [shape = 's32[2]{0}', space=sflag, size = 0x8, scoped, tag = 'scoped memory for tpu_custom_call.1']
    %8 = vsyncpa [#allocation3], 0
    %s9 = scalar_lea.sflag [#allocation3], 1
    %10 = vsyncpa %s9, 0
    loop: start=0, step=1, limit=4
    $region2: #{tpu_custom_call.1} parent=1 // loop_pre_header
      _
    $region3: #{tpu_custom_call.1} parent=1 // loop_header
      %s12 = sphi 0, %s16
      %p13 = scmp.ge.s32.totalorder %s12, 4
      %s22 = sphi 0, %s24
      %s25 = sphi 0, %s22
      %s26 = sphi 0, %s25
      %s42 = sphi 0, %s26
      %s46 = sphi 0, %s46
      %s48 = sphi 0, %s46
      %s49 = sphi 0, %s48
      %s63 = sphi 0, %s49
      %s67 = sphi 0, %s67
      %s69 = sphi 0, %s67
      %s70 = sphi 0, %s69
      %s84 = sphi 0, %s70
      %s90 = sphi 0, %s92
      %s93 = sphi 0, %s90
      %s94 = sphi 0, %s93
      %s110 = sphi 0, %s94
    $region4: #{tpu_custom_call.1} parent=1 // loop_header_branch
      %15 = sbr.rel (%p13) target = $region8
    $region5: #{tpu_custom_call.1} parent=1 // loop_body
      %s17 = ssub.s32 %s12, 1
      %s18 = ssub.s32 %s12, 2
      %s19 = sadd.s32 %s12, 1
      %s20 = ssub.s32 %s12, %s19
      %p21 = scmp.eq.s32.totalorder %s20, 0
      %s23 = sadd.s32 %s22, 1
      %s24 = scalar_select %p21, %s22, %s23
      %p27 = pneg %p21
      %p28 = scmp.eq.s32.totalorder %s12, 1
      %p29 = por %p27, %p28
      %p30 = scmp.ne.s32.totalorder %s22, %s25
      %p31 = scmp.eq.s32.totalorder %s12, 0
      %p32 = por %p30, %p31
      %p33 = scmp.ne.s32.totalorder %s22, %s25
      %p34 = scmp.eq.s32.totalorder %s17, 1
      %p35 = por %p33, %p34
      %p36 = scmp.ne.s32.totalorder %s25, %s26
      %p37 = scmp.eq.s32.totalorder %s17, 0
      %p38 = por %p36, %p37
      %p39 = scmp.ne.s32.totalorder %s25, %s26
      %p40 = scmp.eq.s32.totalorder %s18, 1
      %p41 = por %p39, %p40
      %p43 = scmp.ne.s32.totalorder %s26, %s42
      %p44 = scmp.eq.s32.totalorder %s18, 0
      %p45 = por %p43, %p44
      %s47 = sadd.s32 %s46, 1
      %p50 = scmp.eq.s32.totalorder %s12, 1
      %p51 = scmp.ne.s32.totalorder %s46, %s48
      %p52 = scmp.eq.s32.totalorder %s12, 0
      %p53 = por %p51, %p52
      %p54 = scmp.ne.s32.totalorder %s46, %s48
      %p55 = scmp.eq.s32.totalorder %s17, 1
      %p56 = por %p54, %p55
      %p57 = scmp.ne.s32.totalorder %s48, %s49
      %p58 = scmp.eq.s32.totalorder %s17, 0
      %p59 = por %p57, %p58
      %p60 = scmp.ne.s32.totalorder %s48, %s49
      %p61 = scmp.eq.s32.totalorder %s18, 1
      %p62 = por %p60, %p61
      %p64 = scmp.ne.s32.totalorder %s49, %s63
      %p65 = scmp.eq.s32.totalorder %s18, 0
      %p66 = por %p64, %p65
      %s68 = sadd.s32 %s67, 1
      %p71 = scmp.eq.s32.totalorder %s12, 1
      %p72 = scmp.ne.s32.totalorder %s67, %s69
      %p73 = scmp.eq.s32.totalorder %s12, 0
      %p74 = por %p72, %p73
      %p75 = scmp.ne.s32.totalorder %s67, %s69
      %p76 = scmp.eq.s32.totalorder %s17, 1
      %p77 = por %p75, %p76
      %p78 = scmp.ne.s32.totalorder %s69, %s70
      %p79 = scmp.eq.s32.totalorder %s17, 0
      %p80 = por %p78, %p79
      %p81 = scmp.ne.s32.totalorder %s69, %s70
      %p82 = scmp.eq.s32.totalorder %s18, 1
      %p83 = por %p81, %p82
      %p85 = scmp.ne.s32.totalorder %s70, %s84
      %p86 = scmp.eq.s32.totalorder %s18, 0
      %p87 = por %p85, %p86
      %s88 = ssub.s32 %s12, %s19
      %p89 = scmp.eq.s32.totalorder %s88, 0
      %s91 = sadd.s32 %s90, 1
      %s92 = scalar_select %p89, %s90, %s91
      %p95 = pneg %p89
      %p96 = scmp.eq.s32.totalorder %s12, 1
      %p97 = por %p95, %p96
      %p98 = scmp.ne.s32.totalorder %s90, %s93
      %p99 = scmp.eq.s32.totalorder %s12, 0
      %p100 = por %p98, %p99
      %p101 = scmp.ne.s32.totalorder %s90, %s93
      %p102 = scmp.eq.s32.totalorder %s17, 1
      %p103 = por %p101, %p102
      %p104 = scmp.ne.s32.totalorder %s93, %s94
      %p105 = scmp.eq.s32.totalorder %s17, 0
      %p106 = por %p104, %p105
      %p107 = scmp.ne.s32.totalorder %s93, %s94
      %p108 = scmp.eq.s32.totalorder %s18, 1
      %p109 = por %p107, %p108
      %p111 = scmp.ne.s32.totalorder %s94, %s110
      %p112 = scmp.eq.s32.totalorder %s18, 0
      %p113 = por %p111, %p112
      %p114 = scmp.le.s32.totalorder 1, %s12
      %p115 = scmp.lt.s32.totalorder %s12, 3
      %p116 = pnand %p114, %p115
      %p117 = pneg %p116
      // Predicated region
      $region9: #{tpu_custom_call.1} parent=5 // pred_check
        _
      $region10: #{tpu_custom_call.1} parent=5 // pred_check_branch
        %119 = sbr.rel (%p116) target = $region12
      $region11: #{tpu_custom_call.1} parent=5 // pred_region
        %s120 = ssub.s32 %s12, 1
        // Predicated region
        $region13: #{tpu_custom_call.1} parent=11 // pred_check
          %p121 = pneg %p59
        $region14: #{tpu_custom_call.1} parent=11 // pred_check_branch
          %123 = sbr.rel (%p121) target = $region16
        $region15: #{tpu_custom_call.1} parent=11 // pred_region
          _
        $region16: #{tpu_custom_call.1} parent=11 // pred_fallthru
          _
        // Predicated region
        $region17: #{tpu_custom_call.1} parent=11 // pred_check
          %p124 = pneg %p80
        $region18: #{tpu_custom_call.1} parent=11 // pred_check_branch
          %126 = sbr.rel (%p124) target = $region20
        $region19: #{tpu_custom_call.1} parent=11 // pred_region
          _
        $region20: #{tpu_custom_call.1} parent=11 // pred_fallthru
          _
      $region12: #{tpu_custom_call.1} parent=5 // pred_fallthru
        _
      %p127 = scmp.lt.s32.totalorder %s12, 2
      // Predicated region
      $region21: #{tpu_custom_call.1} parent=5 // pred_check
        %p128 = pneg %p127
      $region22: #{tpu_custom_call.1} parent=5 // pred_check_branch
        %130 = sbr.rel (%p128) target = $region24
      $region23: #{tpu_custom_call.1} parent=5 // pred_region
        // Predicated region
        $region25: #{tpu_custom_call.1} parent=23 // pred_check
          %p131 = pneg %p32
        $region26: #{tpu_custom_call.1} parent=23 // pred_check_branch
          %133 = sbr.rel (%p131) target = $region28
        $region27: #{tpu_custom_call.1} parent=23 // pred_region
          %s134 = smul.u32 8, %s12
          %p135 = scmp.lt.s32.totalorder %s134, 15
          %s136 = scalar_select %p135, %s134, 15
          %s137 = smul.addr %s136, 8
          %s138 = scalar_lea.vmem %s0, %s137
          %s139 = smul.u32 8, %s12
        $region28: #{tpu_custom_call.1} parent=23 // pred_fallthru
          _
      $region24: #{tpu_custom_call.1} parent=5 // pred_fallthru
        _
      %p140 = scmp.le.s32.totalorder 1, %s12
      %p141 = scmp.lt.s32.totalorder %s12, 3
      %p142 = pnand %p140, %p141
      %p143 = pneg %p142
      // Predicated region
      $region29: #{tpu_custom_call.1} parent=5 // pred_check
        _
      $region30: #{tpu_custom_call.1} parent=5 // pred_check_branch
        %145 = sbr.rel (%p142) target = $region32
      $region31: #{tpu_custom_call.1} parent=5 // pred_region
        %s146 = ssub.s32 %s12, 1
        %s147 = smul.u32 8, %s17
        %p148 = scmp.lt.s32.totalorder %s147, 15
        %s149 = scalar_select %p148, %s147, 15
        %s150 = smul.addr %s149, 8
        %s151 = scalar_lea.vmem %s0, %s150
        %p152 = pneg %p38
        %p153 = pneg %p35
        %p154 = pneg %p59
        %p155 = pneg %p56
        %p156 = pneg %p80
        %p157 = pneg %p77
        %p158 = pneg %p106
        %p159 = pneg %p103
        %s160 = sand.u32 %s93, 1
        %s161 = scalar_lea.sflag [#allocation3], %s160
        %s162 = sand.u32 %s93, 1
        %s163 = smul.addr %s162, 64
        %s164 = scalar_lea.vmem [#allocation2], %s163
        %s165 = smul.u32 8, %s17
        %p166 = scmp.lt.s32.totalorder %s165, 15
        %s167 = scalar_select %p166, %s165, 15
        %s168 = smul.addr %s167, 8
        %s169 = scalar_lea.vmem %s0, %s168
        %s170 = smul.u32 8, %s17
        %s171 = smul.u32 8, %s17
        %v172 = vld [vmem:[%s169] sm:$0xff]
        %v173 = vld [vmem:[%s169 + $0x8] sm:$0xff]
        %v174 = vld [vmem:[%s169 + $0x10] sm:$0xff]
        %v175 = vld [vmem:[%s169 + $0x18] sm:$0xff]
        %v176 = vld [vmem:[%s169 + $0x20] sm:$0xff]
        %v177 = vld [vmem:[%s169 + $0x28] sm:$0xff]
        %v178 = vld [vmem:[%s169 + $0x30] sm:$0xff]
        %v179 = vld [vmem:[%s169 + $0x38] sm:$0xff]
        %v180 = vld [vmem:[%s1] sm:$0xff]
        %v181 = vld [vmem:[%s1 + $0x8] sm:$0xff]
        %v182 = vld [vmem:[%s1 + $0x10] sm:$0xff]
        %v183 = vld [vmem:[%s1 + $0x18] sm:$0xff]
        %v184 = vld [vmem:[%s1 + $0x20] sm:$0xff]
        %v185 = vld [vmem:[%s1 + $0x28] sm:$0xff]
        %v186 = vld [vmem:[%s2] sm:$0x1]
        %v188 = vperm.slane %v186, 0
        %vm190 = vcmask 392192
        %v192 = vsel %vm190, %v172, 0
        %v195 = vsel %vm190, %v173, 0
        %v198 = vsel %vm190, %v174, 0
        %v201 = vsel %vm190, %v175, 0
        %v204 = vsel %vm190, %v176, 0
        %v207 = vsel %vm190, %v177, 0
        %v210 = vsel %vm190, %v178, 0
        %v213 = vsel %vm190, %v179, 0
        %215 = vmatpush.msra.mxu0 0.0
        %216 = vmatpush.msra.mxu0 0.0
        %217 = vmatpush.msra.mxu0 0.0
        %218 = vmatpush.msra.mxu0 0.0
        %219 = vmatpush.msra.mxu0 0.0
        %220 = vmatpush.msra.mxu0 0.0
        %221 = vmatpush.msra.mxu0 0.0
        %222 = vmatpush.msra.mxu0 0.0
        %223 = vmatpush.msra.mxu0 0.0
        %224 = vmatpush.msra.mxu0 0.0
        %225 = vmatpush.msra.mxu0 %v185
        %226 = vmatpush.msra.mxu0 %v184
        %227 = vmatpush.msra.mxu0 %v183
        %228 = vmatpush.msra.mxu0 %v182
        %229 = vmatpush.msra.mxu0 %v181
        %230 = vmatpush.msra.mxu0 %v180
        %231 = vmatmul.f32.gmra.mxu0 %v192
        %v232 = vpop.f32.mrf.mxu0
        %v233 = vadd.f32 %v188, %v232
        %234 = vmatmul.f32.gmra.mxu0 %v195
        %v235 = vpop.f32.mrf.mxu0
        %v236 = vadd.f32 %v188, %v235
        %237 = vmatmul.f32.gmra.mxu0 %v198
        %v238 = vpop.f32.mrf.mxu0
        %v239 = vadd.f32 %v188, %v238
        %240 = vmatmul.f32.gmra.mxu0 %v201
        %v241 = vpop.f32.mrf.mxu0
        %v242 = vadd.f32 %v188, %v241
        %243 = vmatmul.f32.gmra.mxu0 %v204
        %v244 = vpop.f32.mrf.mxu0
        %v245 = vadd.f32 %v188, %v244
        %246 = vmatmul.f32.gmra.mxu0 %v207
        %v247 = vpop.f32.mrf.mxu0
        %v248 = vadd.f32 %v188, %v247
        %249 = vmatmul.f32.gmra.mxu0 %v210
        %v250 = vpop.f32.mrf.mxu0
        %v251 = vadd.f32 %v188, %v250
        %252 = vmatmul.f32.gmra.mxu0 %v213
        %v253 = vpop.f32.mrf.mxu0
        %v254 = vadd.f32 %v188, %v253
        %255 = vdwg.mxu0
        %v256 = vmax.f32 %v233, 0.0
        %v257 = vmax.f32 %v236, 0.0
        %v258 = vmax.f32 %v239, 0.0
        %v259 = vmax.f32 %v242, 0.0
        %v260 = vmax.f32 %v245, 0.0
        %v261 = vmax.f32 %v248, 0.0
        %v262 = vmax.f32 %v251, 0.0
        %v263 = vmax.f32 %v254, 0.0
        %264 = vst [vmem:[%s164] sm:$0xff] %v256
        %265 = vst [vmem:[%s164 + $0x8] sm:$0xff] %v257
        %266 = vst [vmem:[%s164 + $0x10] sm:$0xff] %v258
        %267 = vst [vmem:[%s164 + $0x18] sm:$0xff] %v259
        %268 = vst [vmem:[%s164 + $0x20] sm:$0xff] %v260
        %269 = vst [vmem:[%s164 + $0x28] sm:$0xff] %v261
        %270 = vst [vmem:[%s164 + $0x30] sm:$0xff] %v262
        %271 = vst [vmem:[%s164 + $0x38] sm:$0xff] %v263
        %s272 = sand.u32 %s93, 1
        %s273 = scalar_lea.sflag [#allocation3], %s272
        %s274 = sand.u32 %s93, 1
        %s275 = smul.addr %s274, 64
        %s276 = scalar_lea.vmem [#allocation2], %s275
        // Predicated region
        $region33: #{tpu_custom_call.1} parent=31 // pred_check
          %p277 = pneg %p103
        $region34: #{tpu_custom_call.1} parent=31 // pred_check_branch
          %279 = sbr.rel (%p277) target = $region36
        $region35: #{tpu_custom_call.1} parent=31 // pred_region
          %s280 = smul.u32 8, %s17
          %282 = vsyncadd %s273, 0
          %s283 = smul.addr %s280, 8
          %s284 = scalar_lea.hbm %s3, %s283
          %s285 = sshll.u32 %s276, 4
          %s286 = int_to_ptr.vmem [resolvable:$true] %s285
          %s287 = sshll.u32 %s284, 4
          %s288 = int_to_ptr.hbm [resolvable:$true] %s287
          %293 = dma.vmem_to_hbm [thread:$0]  %s286, 1024, %s288, %s273, 128, 128, 8
        $region36: #{tpu_custom_call.1} parent=31 // pred_fallthru
          _
      $region32: #{tpu_custom_call.1} parent=5 // pred_fallthru
        _
      %p294 = scmp.le.s32.totalorder 2, %s12
      // Predicated region
      $region37: #{tpu_custom_call.1} parent=5 // pred_check
        %p295 = pneg %p294
      $region38: #{tpu_custom_call.1} parent=5 // pred_check_branch
        %297 = sbr.rel (%p295) target = $region40
      $region39: #{tpu_custom_call.1} parent=5 // pred_region
        %s298 = ssub.s32 %s12, 2
        // Predicated region
        $region41: #{tpu_custom_call.1} parent=39 // pred_check
          %p299 = pneg %p109
        $region42: #{tpu_custom_call.1} parent=39 // pred_check_branch
          %301 = sbr.rel (%p299) target = $region44
        $region43: #{tpu_custom_call.1} parent=39 // pred_region
          %s302 = sand.u32 %s94, 1
          %s303 = scalar_lea.sflag [#allocation3], %s302
          %s304 = sand.u32 %s94, 1
          %s305 = smul.addr %s304, 64
          %s306 = scalar_lea.vmem [#allocation2], %s305
          %308 = dma.done %s303, 1024
        $region44: #{tpu_custom_call.1} parent=39 // pred_fallthru
          _
      $region40: #{tpu_custom_call.1} parent=5 // pred_fallthru
        _
    $region6: #{tpu_custom_call.1} parent=1 // loop_footer
      %s16 = sadd.s32 1, %s12
    $region7: #{tpu_custom_call.1} parent=1 // loop_footer_branch
      %11 = sbr.rel target = $region3
    $region8: #{tpu_custom_call.1} parent=1 // loop_exit
      _
    %309 = vsyncpa [#allocation3], 1
    %s310 = scalar_lea.sflag [#allocation3], 1
    %311 = vsyncpa %s310, 1

</llo_original>
